<compile_context>
chip_gen: v5e
topology: v5e:2x2
jax: 0.10.0
libtpu: 0.0.40
codegen_flags: <defaults>
</compile_context>

<pallas_src>
import functools

import jax
import jax.numpy as jnp
from jax.experimental import pallas as pl
from jax.experimental.pallas import tpu as pltpu

_LANE = 128
_SUBLANE_ROW_BYTES = _LANE * 4          # one lane-padded 32-bit VMEM row
_MEAN_CORE_SPLIT = 2                    # v7x has 2 TensorCores; harmless (serial) elsewhere
_VMEM_LIMIT_BYTES = 32 * 1024 * 1024    # explicit scoped-VMEM limit (>= v5e 16 MiB default)
_VMEM_WORK_BUDGET = 16 * 1024 * 1024    # working-set target; 2x headroom under the limit


def _round_up(a: int, b: int) -> int:
    return pl.cdiv(a, b) * b


def _sublane_rows(itemsize: int) -> int:
    # Native second-minor granule: 8 rows for 32-bit, 16 for bf16, 32 for 8-bit.
    return 8 * max(1, 4 // itemsize)


def _choose_block_rows(n: int, c: int, itemsize: int) -> int:
    """Pick TN from a byte-accurate VMEM model (lane padding included), capped by bytes
    not rows, rounded to a multiple of 128 rows when affordable (lane-dense output)."""
    sub = _sublane_rows(itemsize)
    c_pad = _round_up(c, _LANE)
    # Per tile row resident in VMEM:
    #   logits: 2 pipeline buffers + ~2 block-sized elementwise temporaries
    #   targets: 2 pipeline buffers of a lane-padded int32 column
    #   ~6 live (TN,1) f32 column intermediates (m, s, x_t, log_p, p, focal, loss)
    per_row = 4 * c_pad * itemsize + 2 * _SUBLANE_ROW_BYTES + 6 * _SUBLANE_ROW_BYTES
    raw = _VMEM_WORK_BUDGET // per_row
    tn = max(sub, (raw // sub) * sub)
    if tn >= _LANE:
        tn = (tn // _LANE) * _LANE      # prefer 128-row multiples (lane-dense 'none' output)
    return min(tn, _round_up(n, sub))


def _row_focal_loss(x, t, gamma):
    """Focal loss for a (TN, C) logits block and (TN, 1) int32 targets -> (TN, 1) f32."""
    m = jnp.max(x, axis=-1, keepdims=True)                        # (TN, 1), input dtype
    e = jnp.exp(x - m)                                            # (TN, C), input dtype
    s = jnp.sum(e, axis=-1, keepdims=True, dtype=jnp.float32)     # (TN, 1) f32

    # Gather x[row, target[row]]: select + lane reduce in the input dtype (exact —
    # only one nonzero per row), cast to f32 only on the small result.
    col = jax.lax.broadcasted_iota(jnp.int32, x.shape, 1)
    x_t = jnp.sum(jnp.where(col == t, x, 0), axis=-1,
                  keepdims=True).astype(jnp.float32)              # (TN, 1) f32

    log_p = (x_t - m.astype(jnp.float32)) - jnp.log(s)            # (TN, 1), <= 0
    p = jnp.exp(log_p)
    omp = 1.0 - p

    g = float(gamma)
    if g == 0.0:
        focal = jnp.ones_like(p)
    elif g.is_integer():
        focal = omp
        for _ in range(int(g) - 1):                               # gamma=2 -> one VPU mul
            focal = focal * omp
    else:
        focal = jnp.where(omp > 0.0,
                          jnp.exp(jnp.float32(g) * jnp.log1p(-p)),
                          jnp.zeros_like(p))                      # guard p == 1 exactly

    return -(focal * log_p)


def _focal_loss_rows_kernel(x_ref, t_ref, loss_ref, *, gamma):
    """reduction='none': per-row losses, stored lane-dense as a (1, TN) row."""
    loss = _row_focal_loss(x_ref[...], t_ref[...], gamma)         # (TN, 1) f32
    # One small XLU relayout instead of a masked (TN, 1) column store.
    loss_ref[...] = jnp.transpose(loss, (1, 0)).astype(loss_ref.dtype)


def _focal_loss_sum_kernel(x_ref, t_ref, sum_ref, *, gamma, n_rows, block_rows,
                           tiles_per_core):
    """reduction='mean': per-core masked partial sum in a resident (8, 128) block."""
    core = pl.program_id(0)
    i = pl.program_id(1)

    @pl.when(i == 0)
    def _init():
        sum_ref[...] = jnp.zeros_like(sum_ref)

    loss = _row_focal_loss(x_ref[...], t_ref[...], gamma)         # (TN, 1) f32
    # Mask clipped / duplicated (clamped phantom tile) rows via the *logical* tile index.
    tile = core * tiles_per_core + i
    row = tile * block_rows + jax.lax.broadcasted_iota(jnp.int32, loss.shape, 0)
    loss = jnp.where(row < n_rows, loss, 0.0)
    sum_ref[...] += jnp.sum(loss, axis=0, keepdims=True)          # (1,1) -> broadcast (8,128)


def focal_loss(logits: jax.Array, target: jax.Array, *,
               gamma: float = 2.0, reduction: str = "mean",
               block_rows: int | None = None):
    """Pallas TPU focal loss.

    logits: (N, C) float, target: (N,) int in [0, C-1].
    Returns (N, 1) losses for reduction in ('none', None), scalar for 'mean'.
    """
    assert reduction in ("none", None, "mean")
    assert gamma >= 0.0
    n, c = logits.shape
    itemsize = jnp.dtype(logits.dtype).itemsize
    sub = _sublane_rows(itemsize)

    if block_rows is None:
        tn = _choose_block_rows(n, c, itemsize)
    else:
        tn = max(sub, _round_up(int(block_rows), sub))
        tn = min(tn, _round_up(n, sub))
    num_tiles = pl.cdiv(n, tn)

    x = logits
    t = target.astype(jnp.int32).reshape(n, 1)

    if reduction == "mean":
        cores = min(_MEAN_CORE_SPLIT, num_tiles)
        tiles_per_core = pl.cdiv(num_tiles, cores)

        def tile_idx(core, i):
            # Clamp so the phantom tile (cores * tiles_per_core > num_tiles) never DMAs
            # out of bounds; its rows are zeroed by the logical-row mask in the kernel.
            return jnp.minimum(core * tiles_per_core + i, num_tiles - 1)

        partial = pl.pallas_call(
            functools.partial(_focal_loss_sum_kernel, gamma=gamma, n_rows=n,
                              block_rows=tn, tiles_per_core=tiles_per_core),
            out_shape=jax.ShapeDtypeStruct((cores * 8, _LANE), jnp.float32),
            grid_spec=pl.GridSpec(
                grid=(cores, tiles_per_core),
                in_specs=[
                    pl.BlockSpec((tn, c), lambda core, i: (tile_idx(core, i), 0)),
                    pl.BlockSpec((tn, 1), lambda core, i: (tile_idx(core, i), 0)),
                ],
                out_specs=pl.BlockSpec((8, _LANE), lambda core, i: (core, 0)),
            ),
            compiler_params=pltpu.CompilerParams(
                dimension_semantics=("parallel", "arbitrary"),
                vmem_limit_bytes=_VMEM_LIMIT_BYTES),
        )(x, t)
        # Per-core partial sums live at element [0, 0] of each core's (8, 128) block.
        total = jnp.sum(partial.reshape(cores, 8, _LANE)[:, 0, 0])
        return total / jnp.float32(n)

    # reduction in ('none', None): lane-dense (num_tiles, TN) output, tiles independent.
    losses = pl.pallas_call(
        functools.partial(_focal_loss_rows_kernel, gamma=gamma),
        out_shape=jax.ShapeDtypeStruct((num_tiles, tn), jnp.float32),
        grid_spec=pl.GridSpec(
            grid=(num_tiles,),
            in_specs=[
                pl.BlockSpec((tn, c), lambda i: (i, 0)),
                pl.BlockSpec((tn, 1), lambda i: (i, 0)),
            ],
            out_specs=pl.BlockSpec((1, tn), lambda i: (i, 0)),
        ),
        compiler_params=pltpu.CompilerParams(
            dimension_semantics=("parallel",),
            vmem_limit_bytes=_VMEM_LIMIT_BYTES),
    )(x, t)
    # Cheap layout plumbing on (num_tiles*TN,) f32; clipped garbage rows are sliced away.
    return losses.reshape(num_tiles * tn)[:n].reshape(n, 1)


def _focal_loss_ref(logits, target, gamma, reduction):
    sm = jax.nn.softmax(logits.astype(jnp.float32), axis=1)
    p = jnp.take_along_axis(sm, target.reshape(-1, 1).astype(jnp.int32), axis=1)
    losses = -((1.0 - p) ** gamma) * jnp.log(p)
    if reduction in ("none", None):
        return losses
    return jnp.mean(losses)


if __name__ == "__main__":
    gamma = 2.0
    # TODO(synk): `self.exp` is stored in the module's __init__ but never used by forward(); omitted.

    key = jax.random.PRNGKey(0)
    k1, k2, k3, k4 = jax.random.split(key, 4)

    # Case 1: small single-tile problem.
    N1, C1 = 8, 32
    x1 = jax.random.normal(k1, (N1, C1), dtype=jnp.float32)
    t1 = jax.random.randint(k2, (N1,), 0, C1, dtype=jnp.int32)

    out_mean = jax.block_until_ready(focal_loss(x1, t1, gamma=gamma, reduction="mean"))
    ref_mean = _focal_loss_ref(x1, t1, gamma, "mean")
    assert jnp.allclose(out_mean, ref_mean, atol=2e-5, rtol=2e-5), (out_mean, ref_mean)

    out_none = jax.block_until_ready(focal_loss(x1, t1, gamma=gamma, reduction="none"))
    ref_none = _focal_loss_ref(x1, t1, gamma, "none")
    assert out_none.shape == (N1, 1)
    assert jnp.allclose(out_none, ref_none, atol=2e-5, rtol=2e-5)

    # Case 2: N not a multiple of the tile -> exercises clipped last block (no jnp.pad),
    # the row mask, the two-core mean split (with a clamped phantom tile), and the
    # lane-dense 'none' output reshape/slice.
    N2, C2 = 20, 64
    x2 = jax.random.normal(k3, (N2, C2), dtype=jnp.float32)
    t2 = jax.random.randint(k4, (N2,), 0, C2, dtype=jnp.int32)

    out_mean2 = jax.block_until_ready(
        focal_loss(x2, t2, gamma=gamma, reduction="mean", block_rows=8))
    ref_mean2 = _focal_loss_ref(x2, t2, gamma, "mean")
    assert jnp.allclose(out_mean2, ref_mean2, atol=2e-5, rtol=2e-5), (out_mean2, ref_mean2)

    out_none2 = jax.block_until_ready(
        focal_loss(x2, t2, gamma=gamma, reduction="none", block_rows=8))
    ref_none2 = _focal_loss_ref(x2, t2, gamma, "none")
    assert out_none2.shape == (N2, 1)
    assert jnp.allclose(out_none2, ref_none2, atol=2e-5, rtol=2e-5)

    print("KERNEL_OK")
</pallas_src>

<mosaic_0001>
module attributes {stable_mosaic.version = 11 : i64} {
  func.func @_focal_loss_sum_kernel(%arg0: i32, %arg1: i32, %arg2: memref<8x32xf32, #tpu.memory_space<vmem>>, %arg3: memref<8x1xi32, #tpu.memory_space<vmem>>, %arg4: memref<8x128xf32, #tpu.memory_space<vmem>>) attributes {dimension_semantics = [#tpu.dimension_semantics<parallel>, #tpu.dimension_semantics<arbitrary>], iteration_bounds = array<i64: 1, 1>, scalar_prefetch = 0 : i64, scratch_operands = 0 : i64, tpu.core_type = #tpu.core_type<tc>, window_params = [{transform_indices = @transform_0, window_bounds = array<i64: 8, 32>}, {transform_indices = @transform_1, window_bounds = array<i64: 8, 1>}, {transform_indices = @transform_2, window_bounds = array<i64: 8, 128>}]} {
    %c0_i32 = arith.constant 0 : i32
    %0 = arith.cmpi eq, %arg1, %c0_i32 : i32
    %1 = arith.extui %0 : i1 to i32
    %c0_i32_0 = arith.constant 0 : i32
    %2 = arith.cmpi ne, %1, %c0_i32_0 : i32
    scf.if %2 {
      %cst_16 = arith.constant 0.000000e+00 : f32
      %46 = vector.broadcast %cst_16 : f32 to vector<8x128xf32>
      %c0_17 = arith.constant 0 : index
      %c0_18 = arith.constant 0 : index
      %47 = vector.load %arg4[%c0_17, %c0_18] : memref<8x128xf32, #tpu.memory_space<vmem>>, vector<8x128xf32>
      tpu.vector_store %arg4[%c0_17, %c0_18], %46 {strides = array<i32>} : memref<8x128xf32, #tpu.memory_space<vmem>>, vector<8x128xf32>,
    } else {
    }
    %c0 = arith.constant 0 : index
    %c0_1 = arith.constant 0 : index
    %3 = vector.load %arg2[%c0, %c0_1] : memref<8x32xf32, #tpu.memory_space<vmem>>, vector<8x32xf32>
    %c0_2 = arith.constant 0 : index
    %c0_3 = arith.constant 0 : index
    %4 = vector.load %arg3[%c0_2, %c0_3] : memref<8x1xi32, #tpu.memory_space<vmem>>, vector<8x1xi32>
    %cst = arith.constant dense<0xFF800000> : vector<8xf32>
    %5 = vector.multi_reduction <maximumf>, %3, %cst [1] : vector<8x32xf32> to vector<8xf32>
    %6 = vector.shape_cast %5 : vector<8xf32> to vector<8x1xf32>
    %7 = vector.broadcast %6 : vector<8x1xf32> to vector<8x32xf32>
    %8 = arith.subf %3, %7 : vector<8x32xf32>
    %9 = math.exp %8 : vector<8x32xf32>
    %cst_4 = arith.constant dense<0.000000e+00> : vector<8xf32>
    %10 = vector.multi_reduction <add>, %9, %cst_4 [1] : vector<8x32xf32> to vector<8xf32>
    %11 = vector.shape_cast %10 : vector<8xf32> to vector<8x1xf32>
    %12 = tpu.iota {dimensions = array<i32: 1>} : vector<8x32xi32>
    %13 = vector.broadcast %4 : vector<8x1xi32> to vector<8x32xi32>
    %14 = arith.cmpi eq, %12, %13 : vector<8x32xi32>
    %c0_i32_5 = arith.constant 0 : i32
    %15 = arith.sitofp %c0_i32_5 : i32 to f32
    %16 = vector.broadcast %15 : f32 to vector<8x32xf32>
    %17 = arith.select %14, %3, %16 : vector<8x32xi1>, vector<8x32xf32>
    %cst_6 = arith.constant dense<0.000000e+00> : vector<8xf32>
    %18 = vector.multi_reduction <add>, %17, %cst_6 [1] : vector<8x32xf32> to vector<8xf32>
    %19 = vector.shape_cast %18 : vector<8xf32> to vector<8x1xf32>
    %20 = arith.subf %19, %6 : vector<8x1xf32>
    %21 = math.log %11 : vector<8x1xf32>
    %22 = arith.subf %20, %21 : vector<8x1xf32>
    %23 = math.exp %22 : vector<8x1xf32>
    %cst_7 = arith.constant 1.000000e+00 : f32
    %24 = vector.broadcast %cst_7 : f32 to vector<8x1xf32>
    %25 = arith.subf %24, %23 : vector<8x1xf32>
    %26 = arith.mulf %25, %25 : vector<8x1xf32>
    %27 = arith.mulf %26, %22 : vector<8x1xf32>
    %cst_8 = arith.constant 0.000000e+00 : f32
    %28 = vector.broadcast %cst_8 : f32 to vector<8x1xf32>
    %29 = arith.subf %28, %27 : vector<8x1xf32>
    %c1_i32 = arith.constant 1 : i32
    %30 = arith.muli %arg0, %c1_i32 : i32
    %31 = arith.addi %30, %arg1 : i32
    %c8_i32 = arith.constant 8 : i32
    %32 = arith.muli %31, %c8_i32 : i32
    %33 = tpu.iota {dimensions = array<i32: 0>} : vector<8x1xi32>
    %34 = vector.broadcast %32 : i32 to vector<8x1xi32>
    %35 = arith.addi %34, %33 : vector<8x1xi32>
    %c8_i32_9 = arith.constant 8 : i32
    %36 = vector.broadcast %c8_i32_9 : i32 to vector<8x1xi32>
    %37 = arith.cmpi slt, %35, %36 : vector<8x1xi32>
    %cst_10 = arith.constant 0.000000e+00 : f32
    %38 = vector.broadcast %cst_10 : f32 to vector<8x1xf32>
    %39 = arith.select %37, %29, %38 : vector<8x1xi1>, vector<8x1xf32>
    %c0_11 = arith.constant 0 : index
    %c0_12 = arith.constant 0 : index
    %40 = vector.load %arg4[%c0_11, %c0_12] : memref<8x128xf32, #tpu.memory_space<vmem>>, vector<8x128xf32>
    %cst_13 = arith.constant dense<0.000000e+00> : vector<1xf32>
    %41 = vector.multi_reduction <add>, %39, %cst_13 [0] : vector<8x1xf32> to vector<1xf32>
    %42 = vector.shape_cast %41 : vector<1xf32> to vector<1x1xf32>
    %43 = vector.broadcast %42 : vector<1x1xf32> to vector<8x128xf32>
    %44 = arith.addf %40, %43 : vector<8x128xf32>
    %c0_14 = arith.constant 0 : index
    %c0_15 = arith.constant 0 : index
    %45 = vector.load %arg4[%c0_14, %c0_15] : memref<8x128xf32, #tpu.memory_space<vmem>>, vector<8x128xf32>
    tpu.vector_store %arg4[%c0_14, %c0_15], %44 {strides = array<i32>} : memref<8x128xf32, #tpu.memory_space<vmem>>, vector<8x128xf32>,
    return
  }
  func.func @transform_0(%arg0: i32, %arg1: i32) -> (i32, i32) {
    %c1_i32 = arith.constant 1 : i32
    %0 = arith.muli %arg0, %c1_i32 : i32
    %1 = arith.addi %0, %arg1 : i32
    %c0_i32 = arith.constant 0 : i32
    %2 = arith.minsi %1, %c0_i32 : i32
    %c0_i32_0 = arith.constant 0 : i32
    %c0_i32_1 = arith.constant 0 : i32
    return %2, %c0_i32_0 : i32, i32
  }
  func.func @transform_1(%arg0: i32, %arg1: i32) -> (i32, i32) {
    %c1_i32 = arith.constant 1 : i32
    %0 = arith.muli %arg0, %c1_i32 : i32
    %1 = arith.addi %0, %arg1 : i32
    %c0_i32 = arith.constant 0 : i32
    %2 = arith.minsi %1, %c0_i32 : i32
    %c0_i32_0 = arith.constant 0 : i32
    %c0_i32_1 = arith.constant 0 : i32
    return %2, %c0_i32_0 : i32, i32
  }
  func.func @transform_2(%arg0: i32, %arg1: i32) -> (i32, i32) {
    %c0_i32 = arith.constant 0 : i32
    %c0_i32_0 = arith.constant 0 : i32
    return %arg0, %c0_i32 : i32, i32
  }
}

</mosaic_0001>

<llo_original>
// kernel: tpu_custom_call.1
$region0: #{tpu_custom_call.1}
  #allocation0 [shape = 'u32[]', space=smem, size = 0x4, offset = 0x4, fixed_abs, tag = 'smem constant byte address 0x4 - core index']
  #allocation1 [shape = 'u32[72,128]{1,0:T(1,128)}', space=vmem, size = 0x9000, scoped, tag = 'internal scratch']
  %s0 = inlined_call_operand.vmem [shape: f32[8,32], index: 0, kind: input, shape index: {}]
  %s1 = inlined_call_operand.vmem [shape: s32[8,1], index: 1, kind: input, shape index: {}]
  %s2 = inlined_call_operand.hbm [shape: f32[8,128], index: 2, kind: output, shape index: {}]
  %s3 = sld [smem:[#allocation0]]
  $region22: #{tpu_custom_call.1} parent=0
    _
  %s5 = ssub.s32 1, %s3
  %s6 = scalar_select 0, %s5, %s3
  $region1: #{tpu_custom_call.1} parent=0
    #allocation2 [shape = 'u8[4096]{0}', space=vmem, size = 0x1000, scoped, tag = 'output window, operand 0, single buffered']
    #allocation3 [shape = 's32[1]{0}', space=sflag, size = 0x4, scoped, tag = 'scoped memory for tpu_custom_call.1']
    %7 = vsyncpa [#allocation3], 0
    // Predicated region
    $region2: #{tpu_custom_call.1} parent=1 // pred_check
      _
    $region3: #{tpu_custom_call.1} parent=1 // pred_check_branch
      %9 = sbr.rel (0) target = $region5
    $region4: #{tpu_custom_call.1} parent=1 // pred_region
      %s10 = sadd.s32 0, 0
      %p11 = scmp.lt.s32.totalorder %s10, 0
      %s12 = scalar_select %p11, %s10, 0
      %p13 = scmp.lt.s32.totalorder %s12, 0
      %s14 = scalar_select %p13, %s12, 0
      %s15 = smul.addr %s14, 8
      %s16 = scalar_lea.vmem %s0, %s15
      %s17 = sadd.s32 0, 0
      %p18 = scmp.lt.s32.totalorder %s17, 0
      %s19 = scalar_select %p18, %s17, 0
    $region5: #{tpu_custom_call.1} parent=1 // pred_fallthru
      _
    // Predicated region
    $region6: #{tpu_custom_call.1} parent=1 // pred_check
      _
    $region7: #{tpu_custom_call.1} parent=1 // pred_check_branch
      %21 = sbr.rel (0) target = $region9
    $region8: #{tpu_custom_call.1} parent=1 // pred_region
      %s22 = sadd.s32 0, 0
      %p23 = scmp.lt.s32.totalorder %s22, 0
      %s24 = scalar_select %p23, %s22, 0
      %p25 = scmp.lt.s32.totalorder %s24, 0
      %s26 = scalar_select %p25, %s24, 0
      %s27 = smul.addr %s26, 8
      %s28 = scalar_lea.vmem %s1, %s27
      %s29 = sadd.s32 0, 0
      %p30 = scmp.lt.s32.totalorder %s29, 0
      %s31 = scalar_select %p30, %s29, 0
    $region9: #{tpu_custom_call.1} parent=1 // pred_fallthru
      _
    %s32 = sadd.s32 0, 0
    %p33 = scmp.lt.s32.totalorder %s32, 0
    %s34 = scalar_select %p33, %s32, 0
    %p35 = scmp.lt.s32.totalorder %s34, 0
    %s36 = scalar_select %p35, %s34, 0
    %s37 = smul.addr %s36, 8
    %s38 = scalar_lea.vmem %s0, %s37
    %s39 = sadd.s32 0, 0
    %p40 = scmp.lt.s32.totalorder %s39, 0
    %s41 = scalar_select %p40, %s39, 0
    %p42 = scmp.lt.s32.totalorder %s41, 0
    %s43 = scalar_select %p42, %s41, 0
    %s44 = smul.addr %s43, 8
    %s45 = scalar_lea.vmem %s1, %s44
    %s46 = sadd.s32 0, 0
    %p47 = scmp.lt.s32.totalorder %s46, 0
    %s48 = scalar_select %p47, %s46, 0
    %p49 = scmp.lt.s32.totalorder %s48, 0
    %s50 = scalar_select %p49, %s48, 0
    %s51 = smul.addr %s50, 8
    %s52 = scalar_lea.vmem %s0, %s51
    %s53 = sadd.s32 0, 0
    %p54 = scmp.lt.s32.totalorder %s53, 0
    %s55 = scalar_select %p54, %s53, 0
    %s56 = sadd.s32 0, 0
    %p57 = scmp.lt.s32.totalorder %s56, 0
    %s58 = scalar_select %p57, %s56, 0
    %p59 = scmp.lt.s32.totalorder %s58, 0
    %s60 = scalar_select %p59, %s58, 0
    %s61 = smul.addr %s60, 8
    %s62 = scalar_lea.vmem %s1, %s61
    %s63 = sadd.s32 0, 0
    %p64 = scmp.lt.s32.totalorder %s63, 0
    %s65 = scalar_select %p64, %s63, 0
    %p66 = scmp.eq.s32.totalorder 0, 0
    // Predicated region
    $region10: #{tpu_custom_call.1} parent=1 // pred_check
      %p67 = pneg %p66
    $region11: #{tpu_custom_call.1} parent=1 // pred_check_branch
      %69 = sbr.rel (%p67) target = $region13
    $region12: #{tpu_custom_call.1} parent=1 // pred_region
      %70 = vst [vmem:[#allocation2] sm:$0xff] 0.0
    $region13: #{tpu_custom_call.1} parent=1 // pred_fallthru
      _
    %v71 = vld [vmem:[%s52] sm:$0xff]
    %v72 = vld [vmem:[%s62] sm:$0xff]
    %vm73 = vcmask 261120
    %v74 = vsel %vm73, %v71, -inf
    %75 = vmax.xlane.f32.xlu0 %v74
    %v76 = vpop.xlane.xlu0 %75
    %v77 = vsub.f32 %v71, %v76
    %v78 = vmul.f32 %v77, 1.442695
    %v79 = vpow.pop %v78
    %v80 = vsel %vm73, %v79, 0.0
    %81 = vadd.xlane.f32.xlu0 %v80
    %v82 = vpop.xlane.xlu0 %81
    %v83 = vlaneseq
    %v84 = vand.u32 %v83, 127
    %85 = vset.pattern.permute.xlu0 0
    %86 = vperm.xlu0 %85, %v72
    %v87 = vpop.permute.xlu0 %86
    %vm88 = vcmp.eq.s32.totalorder %v84, %v87
    %v89 = vsel %vm88, %v71, 0.0
    %v90 = vsel %vm73, %v89, 0.0
    %91 = vadd.xlane.f32.xlu0 %v90
    %v92 = vpop.xlane.xlu0 %91
    %v93 = vsub.f32 %v92, %v76
    %v94 = vlog2.pop %v82
    %v95 = vmul.f32 %v94, 0.6931472
    %v96 = vsub.f32 %v93, %v95
    %v97 = vmul.f32 %v96, 1.442695
    %v98 = vpow.pop %v97
    %v99 = vsub.f32 1.0, %v98
    %v100 = vmul.f32 %v99, %v99
    %v101 = vmul.f32 %v100, %v96
    %v102 = vsub.f32 0.0, %v101
    %s103 = sadd.s32 0, 0
    %s104 = smul.u32 %s103, 8
    %v105 = vlaneseq
    %v106 = vshrl.u32 %v105, 7
    %v107 = vstv %s104
    %v108 = vadd.s32 %v107, %v106
    %vm109 = vcmp.lt.s32.totalorder %v108, 8
    %v110 = vsel %vm109, %v102, 0.0
    %v111 = vld [vmem:[#allocation2] sm:$0xff]
    %v112 = vrot.slane %v110, 4
    %v113 = vadd.f32 %v110, %v112
    %v114 = vrot.slane %v113, 2
    %v115 = vadd.f32 %v113, %v114
    %v116 = vrot.slane %v115, 1
    %v117 = vadd.f32 %v115, %v116
    %v118 = vadd.f32 %v111, %v117
    %119 = vst [vmem:[#allocation2] sm:$0xff] %v118
    // Predicated region
    $region14: #{tpu_custom_call.1} parent=1 // pred_check
      _
    $region15: #{tpu_custom_call.1} parent=1 // pred_check_branch
      %121 = sbr.rel (0) target = $region17
    $region16: #{tpu_custom_call.1} parent=1 // pred_region
      %123 = vsyncadd [#allocation3], 0
      %s125 = sshll.u32 [#allocation2], 4
      %s126 = int_to_ptr.vmem [resolvable:$true] %s125
      %s127 = sshll.u32 %s2, 4
      %s128 = int_to_ptr.hbm [resolvable:$true] %s127
      %130 = dma.vmem_to_hbm [thread:$0]  %s126, 128, %s128, [#allocation3]
    $region17: #{tpu_custom_call.1} parent=1 // pred_fallthru
      _
    // Predicated region
    $region18: #{tpu_custom_call.1} parent=1 // pred_check
      _
    $region19: #{tpu_custom_call.1} parent=1 // pred_check_branch
      %132 = sbr.rel (0) target = $region21
    $region20: #{tpu_custom_call.1} parent=1 // pred_region
      %134 = dma.done [#allocation3], 128
    $region21: #{tpu_custom_call.1} parent=1 // pred_fallthru
      _
    %135 = vsyncpa [#allocation3], 1

</llo_original>
